<compile_context>
chip_gen: v7x
topology: tpu7x:2x2x1
jax: 0.10.0
libtpu: 0.0.40
codegen_flags: <defaults>
</compile_context>

<pallas_src>
import jax
import jax.numpy as jnp
from jax.experimental import pallas as pl
from jax.experimental.pallas import tpu as pltpu

FEATURE_SIZE = 128
HIDDEN = 128
NUM_CLASSES = 130
NEG_BIG = -1.0e30  # fill for padded class lanes; loses the max, exp() -> 0


def _round_up(v, m):
    return ((v + m - 1) // m) * m


def _mlp_log_softmax_kernel(x_ref, w1_ref, b1_ref, w2_ref, b2_ref, o_ref):
    # x_ref: (TB, F) bf16   w1_ref: (F, H) bf16   b1_ref: (1, H) f32
    # w2_ref: (H, Cp) bf16  b2_ref: (1, Cp) f32   o_ref: (TB, Cp) f32
    x = x_ref[...]

    # fc1 + ReLU (bf16 MXU matmul, f32 accumulate; elementwise math in f32)
    h = jnp.dot(x, w1_ref[...], preferred_element_type=jnp.float32) + b1_ref[...]
    h = jnp.maximum(h, 0.0)

    # fc2 (padded class columns: W2 cols are 0, b2 lanes are NEG_BIG)
    logits = jnp.dot(h.astype(jnp.bfloat16), w2_ref[...],
                     preferred_element_type=jnp.float32) + b2_ref[...]

    # Numerically stable log_softmax over the class axis. Padded lanes hold
    # NEG_BIG: they never win the max and exp() underflows to exactly 0, so
    # the real-class result is unaffected.
    m = jnp.max(logits, axis=-1, keepdims=True)
    shifted = logits - m
    lse = jnp.log(jnp.sum(jnp.exp(shifted), axis=-1, keepdims=True))
    o_ref[...] = (shifted - lse).astype(o_ref.dtype)


def face_recognition_forward(x, w1, b1, w2, b2):
    B, F = x.shape
    H = w1.shape[1]
    C = w2.shape[1]

    # ---- pad class dim to a lane-dense multiple of 128 ----
    Cp = _round_up(C, 128)                      # 130 -> 256
    w2_p = jnp.zeros((H, Cp), jnp.float32).at[:, :C].set(w2)
    b2_p = jnp.full((1, Cp), NEG_BIG, jnp.float32).at[0, :C].set(b2)
    b1_2d = b1.reshape(1, H).astype(jnp.float32)

    # ---- batch tiling: TB rows per grid step, batch padded to a multiple ----
    TB = min(512, _round_up(B, 8))              # small B -> one tile; large B -> 512
    B_pad = _round_up(B, TB)
    x_p = x if B_pad == B else jnp.pad(x, ((0, B_pad - B), (0, 0)))

    # bf16 matmul inputs (halves weight/activation DMA, hits bf16 MXU path);
    # accumulation stays f32 inside the kernel.
    x_bf = x_p.astype(jnp.bfloat16)
    w1_bf = w1.astype(jnp.bfloat16)
    w2_bf = w2_p.astype(jnp.bfloat16)

    grid_b = B_pad // TB
    cost = pl.CostEstimate(
        flops=2 * B_pad * (F * H + H * Cp),
        transcendentals=B_pad * (Cp + 1),        # exp per class + log per row
        bytes_accessed=(x_bf.size * 2 + w1_bf.size * 2 + w2_bf.size * 2
                        + b1_2d.size * 4 + b2_p.size * 4 + B_pad * Cp * 4),
    )

    out_padded = pl.pallas_call(
        _mlp_log_softmax_kernel,
        out_shape=jax.ShapeDtypeStruct((B_pad, Cp), jnp.float32),
        grid=(grid_b,),
        in_specs=[
            pl.BlockSpec((TB, F), lambda i: (i, 0)),   # x: tiled over batch
            pl.BlockSpec((F, H), lambda i: (0, 0)),    # w1: VMEM-resident
            pl.BlockSpec((1, H), lambda i: (0, 0)),    # b1: VMEM-resident
            pl.BlockSpec((H, Cp), lambda i: (0, 0)),   # w2: VMEM-resident
            pl.BlockSpec((1, Cp), lambda i: (0, 0)),   # b2: VMEM-resident
        ],
        out_specs=pl.BlockSpec((TB, Cp), lambda i: (i, 0)),
        compiler_params=pltpu.CompilerParams(
            dimension_semantics=("parallel",),         # megacore / v7x 2-TC sharding
        ),
        cost_estimate=cost,
    )(x_bf, w1_bf, b1_2d, w2_bf, b2_p)

    # strip batch + class padding
    return out_padded[:B, :C]


def reference_forward_f32(x, w1, b1, w2, b2):
    h = jnp.maximum(x @ w1 + b1, 0.0)
    logits = h @ w2 + b2
    return jax.nn.log_softmax(logits, axis=1)


def reference_forward_bf16(x, w1, b1, w2, b2):
    # Same bf16-in / f32-accumulate recipe as the kernel, for a tight check.
    h = jnp.dot(x.astype(jnp.bfloat16), w1.astype(jnp.bfloat16),
                preferred_element_type=jnp.float32) + b1
    h = jnp.maximum(h, 0.0)
    logits = jnp.dot(h.astype(jnp.bfloat16), w2.astype(jnp.bfloat16),
                     preferred_element_type=jnp.float32) + b2
    return jax.nn.log_softmax(logits, axis=1)


if __name__ == "__main__":
    key = jax.random.PRNGKey(0)
    k_x, k_w1, k_b1, k_w2, k_b2 = jax.random.split(key, 5)

    batch = 8
    x = jax.random.normal(k_x, (batch, FEATURE_SIZE), dtype=jnp.float32)

    # Deterministic synthetic parameters (uniform, roughly PyTorch-Linear scale).
    bound1 = 1.0 / (FEATURE_SIZE ** 0.5)
    bound2 = 1.0 / (HIDDEN ** 0.5)
    w1 = jax.random.uniform(k_w1, (FEATURE_SIZE, HIDDEN), jnp.float32, -bound1, bound1)
    b1 = jax.random.uniform(k_b1, (HIDDEN,), jnp.float32, -bound1, bound1)
    w2 = jax.random.uniform(k_w2, (HIDDEN, NUM_CLASSES), jnp.float32, -bound2, bound2)
    b2 = jax.random.uniform(k_b2, (NUM_CLASSES,), jnp.float32, -bound2, bound2)

    out = face_recognition_forward(x, w1, b1, w2, b2)
    out = jax.block_until_ready(out)
    assert out.shape == (batch, NUM_CLASSES)

    # Tight check vs. a reference using the same bf16-matmul / f32-accumulate math.
    ref_bf16 = reference_forward_bf16(x, w1, b1, w2, b2)
    assert jnp.allclose(out, ref_bf16, atol=1e-3, rtol=1e-3), "mismatch vs bf16 reference"

    # Loose check vs. the full-f32 PyTorch-equivalent reference (bf16 quantization noise).
    ref_f32 = reference_forward_f32(x, w1, b1, w2, b2)
    assert jnp.allclose(out, ref_f32, atol=5e-2, rtol=5e-2), "mismatch vs f32 reference"

    print("KERNEL_OK")
</pallas_src>

<mosaic_0001>
module attributes {stable_mosaic.version = 11 : i64} {
  func.func @_mlp_log_softmax_kernel(%arg0: i32, %arg1: memref<8x128xbf16, #tpu.memory_space<vmem>>, %arg2: memref<128x128xbf16, #tpu.memory_space<vmem>>, %arg3: memref<1x128xf32, #tpu.memory_space<vmem>>, %arg4: memref<128x256xbf16, #tpu.memory_space<vmem>>, %arg5: memref<1x256xf32, #tpu.memory_space<vmem>>, %arg6: memref<8x256xf32, #tpu.memory_space<vmem>>) attributes {dimension_semantics = [#tpu.dimension_semantics<parallel>], iteration_bounds = array<i64: 1>, scalar_prefetch = 0 : i64, scratch_operands = 0 : i64, tpu.core_type = #tpu.core_type<tc>, window_params = [{transform_indices = @transform_0, window_bounds = array<i64: 8, 128>}, {pipeline_mode = #tpu.pipeline_mode<synchronous>, transform_indices = @transform_1, window_bounds = array<i64: 128, 128>}, {pipeline_mode = #tpu.pipeline_mode<synchronous>, transform_indices = @transform_2, window_bounds = array<i64: 1, 128>}, {pipeline_mode = #tpu.pipeline_mode<synchronous>, transform_indices = @transform_3, window_bounds = array<i64: 128, 256>}, {pipeline_mode = #tpu.pipeline_mode<synchronous>, transform_indices = @transform_4, window_bounds = array<i64: 1, 256>}, {transform_indices = @transform_5, window_bounds = array<i64: 8, 256>}]} {
    %c0 = arith.constant 0 : index
    %c0_0 = arith.constant 0 : index
    %0 = vector.load %arg1[%c0, %c0_0] : memref<8x128xbf16, #tpu.memory_space<vmem>>, vector<8x128xbf16>
    %c0_1 = arith.constant 0 : index
    %c0_2 = arith.constant 0 : index
    %1 = vector.load %arg2[%c0_1, %c0_2] : memref<128x128xbf16, #tpu.memory_space<vmem>>, vector<128x128xbf16>
    %cst = arith.constant dense<0.000000e+00> : vector<8x128xf32>
    %2 = tpu.matmul %0, %1, %cst {dimension_numbers = #tpu.dot_dimension_numbers<[1], [0], [0], [1], [0, 0, 1, 1], [], []>} : vector<8x128xbf16>, vector<128x128xbf16>, vector<8x128xf32> -> vector<8x128xf32>
    %c0_3 = arith.constant 0 : index
    %c0_4 = arith.constant 0 : index
    %3 = vector.load %arg3[%c0_3, %c0_4] : memref<1x128xf32, #tpu.memory_space<vmem>>, vector<1x128xf32>
    %4 = vector.broadcast %3 : vector<1x128xf32> to vector<8x128xf32>
    %5 = arith.addf %2, %4 : vector<8x128xf32>
    %cst_5 = arith.constant 0.000000e+00 : f32
    %6 = vector.broadcast %cst_5 : f32 to vector<8x128xf32>
    %7 = arith.maximumf %5, %6 : vector<8x128xf32>
    %8 = arith.truncf %7 : vector<8x128xf32> to vector<8x128xbf16>
    %c0_6 = arith.constant 0 : index
    %c0_7 = arith.constant 0 : index
    %9 = vector.load %arg4[%c0_6, %c0_7] : memref<128x256xbf16, #tpu.memory_space<vmem>>, vector<128x256xbf16>
    %cst_8 = arith.constant dense<0.000000e+00> : vector<8x256xf32>
    %10 = tpu.matmul %8, %9, %cst_8 {dimension_numbers = #tpu.dot_dimension_numbers<[1], [0], [0], [1], [0, 0, 1, 1], [], []>} : vector<8x128xbf16>, vector<128x256xbf16>, vector<8x256xf32> -> vector<8x256xf32>
    %c0_9 = arith.constant 0 : index
    %c0_10 = arith.constant 0 : index
    %11 = vector.load %arg5[%c0_9, %c0_10] : memref<1x256xf32, #tpu.memory_space<vmem>>, vector<1x256xf32>
    %12 = vector.broadcast %11 : vector<1x256xf32> to vector<8x256xf32>
    %13 = arith.addf %10, %12 : vector<8x256xf32>
    %cst_11 = arith.constant dense<0xFF800000> : vector<8xf32>
    %14 = vector.multi_reduction <maximumf>, %13, %cst_11 [1] : vector<8x256xf32> to vector<8xf32>
    %15 = vector.shape_cast %14 : vector<8xf32> to vector<8x1xf32>
    %16 = vector.broadcast %15 : vector<8x1xf32> to vector<8x256xf32>
    %17 = arith.subf %13, %16 : vector<8x256xf32>
    %18 = math.exp %17 : vector<8x256xf32>
    %cst_12 = arith.constant dense<0.000000e+00> : vector<8xf32>
    %19 = vector.multi_reduction <add>, %18, %cst_12 [1] : vector<8x256xf32> to vector<8xf32>
    %20 = vector.shape_cast %19 : vector<8xf32> to vector<8x1xf32>
    %21 = math.log %20 : vector<8x1xf32>
    %22 = vector.broadcast %21 : vector<8x1xf32> to vector<8x256xf32>
    %23 = arith.subf %17, %22 : vector<8x256xf32>
    %c0_13 = arith.constant 0 : index
    %c0_14 = arith.constant 0 : index
    %24 = vector.load %arg6[%c0_13, %c0_14] : memref<8x256xf32, #tpu.memory_space<vmem>>, vector<8x256xf32>
    tpu.vector_store %arg6[%c0_13, %c0_14], %23 {strides = array<i32>} : memref<8x256xf32, #tpu.memory_space<vmem>>, vector<8x256xf32>,
    return
  }
  func.func @transform_0(%arg0: i32) -> (i32, i32) {
    %c0_i32 = arith.constant 0 : i32
    %c0_i32_0 = arith.constant 0 : i32
    return %arg0, %c0_i32 : i32, i32
  }
  func.func @transform_1(%arg0: i32) -> (i32, i32) {
    %c0_i32 = arith.constant 0 : i32
    %c0_i32_0 = arith.constant 0 : i32
    %c0_i32_1 = arith.constant 0 : i32
    return %c0_i32, %c0_i32_0 : i32, i32
  }
  func.func @transform_2(%arg0: i32) -> (i32, i32) {
    %c0_i32 = arith.constant 0 : i32
    %c0_i32_0 = arith.constant 0 : i32
    %c0_i32_1 = arith.constant 0 : i32
    return %c0_i32, %c0_i32_0 : i32, i32
  }
  func.func @transform_3(%arg0: i32) -> (i32, i32) {
    %c0_i32 = arith.constant 0 : i32
    %c0_i32_0 = arith.constant 0 : i32
    %c0_i32_1 = arith.constant 0 : i32
    return %c0_i32, %c0_i32_0 : i32, i32
  }
  func.func @transform_4(%arg0: i32) -> (i32, i32) {
    %c0_i32 = arith.constant 0 : i32
    %c0_i32_0 = arith.constant 0 : i32
    %c0_i32_1 = arith.constant 0 : i32
    return %c0_i32, %c0_i32_0 : i32, i32
  }
  func.func @transform_5(%arg0: i32) -> (i32, i32) {
    %c0_i32 = arith.constant 0 : i32
    %c0_i32_0 = arith.constant 0 : i32
    return %arg0, %c0_i32 : i32, i32
  }
}

</mosaic_0001>

<llo_original>
// kernel: tpu_custom_call.1
$region0: #{tpu_custom_call.1}
  #allocation0 [shape = 'u32[]', space=smem, size = 0x4, offset = 0x4, fixed_abs, tag = 'smem constant byte address 0x4 - core index']
  #allocation1 [shape = 'u32[144,128]{1,0:T(1,128)}', space=vmem, size = 0x12000, scoped, tag = 'internal scratch']
  %s0 = inlined_call_operand.hbm [shape: bf16[8,128], index: 0, kind: input, shape index: {}]
  %s1 = inlined_call_operand.hbm [shape: bf16[128,128], index: 1, kind: input, shape index: {}]
  %s2 = inlined_call_operand.vmem [shape: f32[1,128], index: 2, kind: input, shape index: {}]
  %s3 = inlined_call_operand.hbm [shape: bf16[128,256], index: 3, kind: input, shape index: {}]
  %s4 = inlined_call_operand.vmem [shape: f32[1,256], index: 4, kind: input, shape index: {}]
  %s5 = inlined_call_operand.hbm [shape: f32[8,256], index: 5, kind: output, shape index: {}]
  %s6 = sld [smem:[#allocation0]]
  $region42: #{tpu_custom_call.1} parent=0
    _
  %s8 = ssub.s32 1, %s6
  %s9 = scalar_select 0, %s8, %s6
  $region1: #{tpu_custom_call.1} parent=0
    #allocation2 [shape = 'u8[2048]{0}', space=vmem, size = 0x800, scoped, tag = 'input window, operand 0, single buffered']
    #allocation3 [shape = 's32[1]{0}', space=sflag, size = 0x4, scoped, tag = 'scoped memory for tpu_custom_call.1']
    #allocation4 [shape = 's32[1]{0}', space=sflag, size = 0x4, scoped, tag = 'scoped memory for tpu_custom_call.1']
    #allocation5 [shape = 'u8[32768]{0}', space=vmem, size = 0x8000, scoped, tag = 'input window, operand 1, single buffered']
    #allocation6 [shape = 's32[1]{0}', space=sflag, size = 0x4, scoped, tag = 'scoped memory for tpu_custom_call.1']
    #allocation7 [shape = 'u8[65536]{0}', space=vmem, size = 0x10000, scoped, tag = 'input window, operand 3, single buffered']
    #allocation8 [shape = 'u8[8192]{0}', space=vmem, size = 0x2000, scoped, tag = 'output window, operand 0, single buffered']
    %10 = vsyncpa [#allocation3], 0
    %11 = vsyncpa [#allocation6], 0
    %12 = vsyncpa [#allocation4], 0
    // Predicated region
    $region2: #{tpu_custom_call.1} parent=1 // pred_check
      _
    $region3: #{tpu_custom_call.1} parent=1 // pred_check_branch
      %14 = sbr.rel (0) target = $region5
    $region4: #{tpu_custom_call.1} parent=1 // pred_region
      %s16 = ssub.s32 64, 64
      %17 = vsyncadd [#allocation3], %s16
      %s19 = sshll.u32 [#allocation2], 4
      %s20 = int_to_ptr.vmem [resolvable:$true] %s19
      %22 = dma.hbm_to_vmem [thread:$0]  %s0, 64, %s20, [#allocation3]
    $region5: #{tpu_custom_call.1} parent=1 // pred_fallthru
      _
    // Predicated region
    $region6: #{tpu_custom_call.1} parent=1 // pred_check
      _
    $region7: #{tpu_custom_call.1} parent=1 // pred_check_branch
      %24 = sbr.rel (0) target = $region9
    $region8: #{tpu_custom_call.1} parent=1 // pred_region
      %s26 = ssub.s32 1024, 1024
      %27 = vsyncadd [#allocation6], %s26
      %s28 = sshll.u32 [#allocation5], 4
      %s29 = int_to_ptr.vmem [resolvable:$true] %s28
      %34 = dma.hbm_to_vmem [thread:$0]  %s1, 1024, %s29, [#allocation6], 64, 64, 4
    $region9: #{tpu_custom_call.1} parent=1 // pred_fallthru
      _
    // Predicated region
    $region10: #{tpu_custom_call.1} parent=1 // pred_check
      _
    $region11: #{tpu_custom_call.1} parent=1 // pred_check_branch
      %36 = sbr.rel (0) target = $region13
    $region12: #{tpu_custom_call.1} parent=1 // pred_region
      _
    $region13: #{tpu_custom_call.1} parent=1 // pred_fallthru
      _
    // Predicated region
    $region14: #{tpu_custom_call.1} parent=1 // pred_check
      _
    $region15: #{tpu_custom_call.1} parent=1 // pred_check_branch
      %38 = sbr.rel (0) target = $region17
    $region16: #{tpu_custom_call.1} parent=1 // pred_region
      %s40 = ssub.s32 2048, 2048
      %41 = vsyncadd [#allocation6], %s40
      %s42 = sshll.u32 [#allocation7], 4
      %s43 = int_to_ptr.vmem [resolvable:$true] %s42
      %48 = dma.hbm_to_vmem [thread:$0]  %s3, 2048, %s43, [#allocation6], 128, 128, 8
    $region17: #{tpu_custom_call.1} parent=1 // pred_fallthru
      _
    // Predicated region
    $region18: #{tpu_custom_call.1} parent=1 // pred_check
      _
    $region19: #{tpu_custom_call.1} parent=1 // pred_check_branch
      %50 = sbr.rel (0) target = $region21
    $region20: #{tpu_custom_call.1} parent=1 // pred_region
      _
    $region21: #{tpu_custom_call.1} parent=1 // pred_fallthru
      _
    // Predicated region
    $region22: #{tpu_custom_call.1} parent=1 // pred_check
      _
    $region23: #{tpu_custom_call.1} parent=1 // pred_check_branch
      %52 = sbr.rel (0) target = $region25
    $region24: #{tpu_custom_call.1} parent=1 // pred_region
      %53 = dma.done [#allocation3], 64
    $region25: #{tpu_custom_call.1} parent=1 // pred_fallthru
      _
    // Predicated region
    $region26: #{tpu_custom_call.1} parent=1 // pred_check
      _
    $region27: #{tpu_custom_call.1} parent=1 // pred_check_branch
      %55 = sbr.rel (0) target = $region29
    $region28: #{tpu_custom_call.1} parent=1 // pred_region
      %56 = dma.done [#allocation6], 1024
    $region29: #{tpu_custom_call.1} parent=1 // pred_fallthru
      _
    // Predicated region
    $region30: #{tpu_custom_call.1} parent=1 // pred_check
      _
    $region31: #{tpu_custom_call.1} parent=1 // pred_check_branch
      %58 = sbr.rel (0) target = $region33
    $region32: #{tpu_custom_call.1} parent=1 // pred_region
      %59 = dma.done [#allocation6], 2048
    $region33: #{tpu_custom_call.1} parent=1 // pred_fallthru
      _
    %v61 = vld [vmem:[#allocation2] sm:$0xf]
    %v62 = vld [vmem:[#allocation5] sm:$0xf]
    %v63 = vld [vmem:[#allocation5 + $0x4] sm:$0xf]
    %v64 = vld [vmem:[#allocation5 + $0x8] sm:$0xf]
    %v65 = vld [vmem:[#allocation5 + $0xc] sm:$0xf]
    %v66 = vld [vmem:[#allocation5 + $0x10] sm:$0xf]
    %v67 = vld [vmem:[#allocation5 + $0x14] sm:$0xf]
    %v68 = vld [vmem:[#allocation5 + $0x18] sm:$0xf]
    %v69 = vld [vmem:[#allocation5 + $0x1c] sm:$0xf]
    %v70 = vld [vmem:[#allocation5 + $0x20] sm:$0xf]
    %v71 = vld [vmem:[#allocation5 + $0x24] sm:$0xf]
    %v72 = vld [vmem:[#allocation5 + $0x28] sm:$0xf]
    %v73 = vld [vmem:[#allocation5 + $0x2c] sm:$0xf]
    %v74 = vld [vmem:[#allocation5 + $0x30] sm:$0xf]
    %v75 = vld [vmem:[#allocation5 + $0x34] sm:$0xf]
    %v76 = vld [vmem:[#allocation5 + $0x38] sm:$0xf]
    %v77 = vld [vmem:[#allocation5 + $0x3c] sm:$0xf]
    %v78 = vld [vmem:[%s2] sm:$0x1]
    %v80 = vlaneseq
    %v81 = vshrl.u32 %v80, 7
    %v82 = vsub.s32 0, %v81
    %v83 = vrot.slane %v78, %v82
    %v101 = vunpack.c.l.b16 %v62
    %v102 = vunpack.c.l.b16 %v63
    %v103 = vunpack.c.l.b16 %v64
    %v104 = vunpack.c.l.b16 %v65
    %v105 = vunpack.c.l.b16 %v66
    %v106 = vunpack.c.l.b16 %v67
    %v107 = vunpack.c.l.b16 %v68
    %v108 = vunpack.c.l.b16 %v69
    %v109 = vunpack.c.l.b16 %v70
    %v110 = vunpack.c.l.b16 %v71
    %v111 = vunpack.c.l.b16 %v72
    %v112 = vunpack.c.l.b16 %v73
    %v113 = vunpack.c.l.b16 %v74
    %v114 = vunpack.c.l.b16 %v75
    %v115 = vunpack.c.l.b16 %v76
    %v116 = vunpack.c.l.b16 %v77
    %v117 = vpack.c.b16 %v102, %v101
    %v118 = vpack.c.b16 %v104, %v103
    %v119 = vpack.c.b16 %v106, %v105
    %v120 = vpack.c.b16 %v108, %v107
    %v121 = vpack.c.b16 %v110, %v109
    %v122 = vpack.c.b16 %v112, %v111
    %v123 = vpack.c.b16 %v114, %v113
    %v124 = vpack.c.b16 %v116, %v115
    %133 = vmatprep.subr.bf16.mxu0 0
    %134 = vmatpush1.bf16.msra.mxu0 %v117
    %135 = vmatprep.subr.bf16.mxu0 0
    %136 = vmatpush1.bf16.msra.mxu0 %v118
    %137 = vmatprep.subr.bf16.mxu0 0
    %138 = vmatpush1.bf16.msra.mxu0 %v119
    %139 = vmatprep.subr.bf16.mxu0 0
    %140 = vmatpush1.bf16.msra.mxu0 %v120
    %141 = vmatprep.subr.bf16.mxu0 0
    %142 = vmatpush1.bf16.msra.mxu0 %v121
    %143 = vmatprep.subr.bf16.mxu0 0
    %144 = vmatpush1.bf16.msra.mxu0 %v122
    %145 = vmatprep.subr.bf16.mxu0 0
    %146 = vmatpush1.bf16.msra.mxu0 %v123
    %147 = vmatprep.subr.bf16.mxu0 0
    %148 = vmatpush1.bf16.msra.mxu0 %v124
    %149 = vmatprep.subr.bf16.mxu0 0
    %150 = vmatpush1.bf16.msra.mxu0 0
    %151 = vmatprep.subr.bf16.mxu0 0
    %152 = vmatpush1.bf16.msra.mxu0 0
    %153 = vmatprep.subr.bf16.mxu0 0
    %154 = vmatpush1.bf16.msra.mxu0 0
    %155 = vmatprep.subr.bf16.mxu0 0
    %156 = vmatpush1.bf16.msra.mxu0 0
    %157 = vmatprep.subr.bf16.mxu0 0
    %158 = vmatpush1.bf16.msra.mxu0 0
    %159 = vmatprep.subr.bf16.mxu0 0
    %160 = vmatpush1.bf16.msra.mxu0 0
    %161 = vmatprep.subr.bf16.mxu0 0
    %162 = vmatpush1.bf16.msra.mxu0 0
    %163 = vmatprep.subr.bf16.mxu0 0
    %164 = vmatpush1.bf16.msra.mxu0 0
    %165 = vmatprep.mubr.bf16.mxu0 0
    %166 = vmatmul.mubr.bf16.gmra.mrb[0].mxu0 %v61
    %v167 = vpop.f32.mrb[0].mxu0
    %v168 = vadd.f32 %v83, %v167
    %v169 = vpop.f32.mrb[0].mxu0
    %v170 = vpop.f32.mrb[0].mxu0
    %v171 = vpop.f32.mrb[0].mxu0
    %172 = vdwg.mxu0
    %v173 = vmax.f32 %v168, 0.0
    %v174 = vpack.c.bf16 %v173, %v173
    %v175 = vld [vmem:[#allocation7] sm:$0xff]
    %v176 = vld [vmem:[#allocation7 + $0x8] sm:$0xff]
    %v177 = vld [vmem:[#allocation7 + $0x10] sm:$0xff]
    %v178 = vld [vmem:[#allocation7 + $0x18] sm:$0xff]
    %v179 = vld [vmem:[#allocation7 + $0x20] sm:$0xff]
    %v180 = vld [vmem:[#allocation7 + $0x28] sm:$0xff]
    %v181 = vld [vmem:[#allocation7 + $0x30] sm:$0xff]
    %v182 = vld [vmem:[#allocation7 + $0x38] sm:$0xff]
    %v183 = vld [vmem:[#allocation7 + $0x40] sm:$0xff]
    %v184 = vld [vmem:[#allocation7 + $0x48] sm:$0xff]
    %v185 = vld [vmem:[#allocation7 + $0x50] sm:$0xff]
    %v186 = vld [vmem:[#allocation7 + $0x58] sm:$0xff]
    %v187 = vld [vmem:[#allocation7 + $0x60] sm:$0xff]
    %v188 = vld [vmem:[#allocation7 + $0x68] sm:$0xff]
    %v189 = vld [vmem:[#allocation7 + $0x70] sm:$0xff]
    %v190 = vld [vmem:[#allocation7 + $0x78] sm:$0xff]
    %v191 = vld [vmem:[%s4] sm:$0x3]
    %v193 = vlaneseq
    %v194 = vshrl.u32 %v193, 7
    %v195 = vsub.s32 0, %v194
    %v196 = vrot.slane %v191, %v195
    %v197 = vlaneseq
    %v198 = vshrl.u32 %v197, 7
    %v199 = vsub.s32 1, %v198
    %v200 = vrot.slane %v191, %v199
    %v219 = vunpack.c.l.b16 %v175
    %v220 = vunpack.c.h.b16 %v175
    %v221 = vunpack.c.l.b16 %v176
    %v222 = vunpack.c.h.b16 %v176
    %v223 = vunpack.c.l.b16 %v177
    %v224 = vunpack.c.h.b16 %v177
    %v225 = vunpack.c.l.b16 %v178
    %v226 = vunpack.c.h.b16 %v178
    %v227 = vunpack.c.l.b16 %v179
    %v228 = vunpack.c.h.b16 %v179
    %v229 = vunpack.c.l.b16 %v180
    %v230 = vunpack.c.h.b16 %v180
    %v231 = vunpack.c.l.b16 %v181
    %v232 = vunpack.c.h.b16 %v181
    %v233 = vunpack.c.l.b16 %v182
    %v234 = vunpack.c.h.b16 %v182
    %v235 = vunpack.c.l.b16 %v183
    %v236 = vunpack.c.h.b16 %v183
    %v237 = vunpack.c.l.b16 %v184
    %v238 = vunpack.c.h.b16 %v184
    %v239 = vunpack.c.l.b16 %v185
    %v240 = vunpack.c.h.b16 %v185
    %v241 = vunpack.c.l.b16 %v186
    %v242 = vunpack.c.h.b16 %v186
    %v243 = vunpack.c.l.b16 %v187
    %v244 = vunpack.c.h.b16 %v187
    %v245 = vunpack.c.l.b16 %v188
    %v246 = vunpack.c.h.b16 %v188
    %v247 = vunpack.c.l.b16 %v189
    %v248 = vunpack.c.h.b16 %v189
    %v249 = vunpack.c.l.b16 %v190
    %v250 = vunpack.c.h.b16 %v190
    %v251 = vpack.c.b16 %v221, %v219
    %v252 = vpack.c.b16 %v222, %v220
    %v253 = vpack.c.b16 %v225, %v223
    %v254 = vpack.c.b16 %v226, %v224
    %v255 = vpack.c.b16 %v229, %v227
    %v256 = vpack.c.b16 %v230, %v228
    %v257 = vpack.c.b16 %v233, %v231
    %v258 = vpack.c.b16 %v234, %v232
    %v259 = vpack.c.b16 %v237, %v235
    %v260 = vpack.c.b16 %v238, %v236
    %v261 = vpack.c.b16 %v241, %v239
    %v262 = vpack.c.b16 %v242, %v240
    %v263 = vpack.c.b16 %v245, %v243
    %v264 = vpack.c.b16 %v246, %v244
    %v265 = vpack.c.b16 %v249, %v247
    %v266 = vpack.c.b16 %v250, %v248
    %283 = vmatprep.subr.bf16.mxu0 %v252
    %284 = vmatpush1.bf16.msra.mxu0 %v251
    %285 = vmatprep.subr.bf16.mxu0 %v254
    %286 = vmatpush1.bf16.msra.mxu0 %v253
    %287 = vmatprep.subr.bf16.mxu0 %v256
    %288 = vmatpush1.bf16.msra.mxu0 %v255
    %289 = vmatprep.subr.bf16.mxu0 %v258
    %290 = vmatpush1.bf16.msra.mxu0 %v257
    %291 = vmatprep.subr.bf16.mxu0 %v260
    %292 = vmatpush1.bf16.msra.mxu0 %v259
    %293 = vmatprep.subr.bf16.mxu0 %v262
    %294 = vmatpush1.bf16.msra.mxu0 %v261
    %295 = vmatprep.subr.bf16.mxu0 %v264
    %296 = vmatpush1.bf16.msra.mxu0 %v263
    %297 = vmatprep.subr.bf16.mxu0 %v266
    %298 = vmatpush1.bf16.msra.mxu0 %v265
    %299 = vmatprep.subr.bf16.mxu0 0
    %300 = vmatpush1.bf16.msra.mxu0 0
    %301 = vmatprep.subr.bf16.mxu0 0
    %302 = vmatpush1.bf16.msra.mxu0 0
    %303 = vmatprep.subr.bf16.mxu0 0
    %304 = vmatpush1.bf16.msra.mxu0 0
    %305 = vmatprep.subr.bf16.mxu0 0
    %306 = vmatpush1.bf16.msra.mxu0 0
    %307 = vmatprep.subr.bf16.mxu0 0
    %308 = vmatpush1.bf16.msra.mxu0 0
    %309 = vmatprep.subr.bf16.mxu0 0
    %310 = vmatpush1.bf16.msra.mxu0 0
    %311 = vmatprep.subr.bf16.mxu0 0
    %312 = vmatpush1.bf16.msra.mxu0 0
    %313 = vmatprep.subr.bf16.mxu0 0
    %314 = vmatpush1.bf16.msra.mxu0 0
    %315 = vmatprep.mubr.bf16.mxu0 0
    %316 = vmatmul.mubr.bf16.gmra.mrb[0].mxu0 %v174
    %v317 = vpop.f32.mrb[0].mxu0
    %v318 = vadd.f32 %v196, %v317
    %v319 = vpop.f32.mrb[0].mxu0
    %v320 = vadd.f32 %v200, %v319
    %v321 = vpop.f32.mrb[0].mxu0
    %v322 = vpop.f32.mrb[0].mxu0
    %323 = vdwg.mxu0
    %v324 = vmax.f32 %v318, %v320
    %325 = vmax.xlane.f32.xlu0 %v324
    %v326 = vpop.xlane.xlu0 %325
    %v327 = vsub.f32 %v318, %v326
    %v328 = vsub.f32 %v320, %v326
    %v329 = vmul.f32 %v327, 1.442695
    %v330 = vpow.pop %v329
    %v331 = vmul.f32 %v328, 1.442695
    %v332 = vpow.pop %v331
    %v333 = vadd.f32 %v330, %v332
    %334 = vadd.xlane.f32.xlu0 %v333
    %v335 = vpop.xlane.xlu0 %334
    %v336 = vlog2.pop %v335
    %v337 = vmul.f32 %v336, 0.6931472
    %v338 = vsub.f32 %v327, %v337
    %v339 = vsub.f32 %v328, %v337
    %340 = vst [vmem:[#allocation8] sm:$0xff] %v338
    %341 = vst [vmem:[#allocation8 + $0x8] sm:$0xff] %v339
    // Predicated region
    $region34: #{tpu_custom_call.1} parent=1 // pred_check
      _
    $region35: #{tpu_custom_call.1} parent=1 // pred_check_branch
      %343 = sbr.rel (0) target = $region37
    $region36: #{tpu_custom_call.1} parent=1 // pred_region
      %s345 = ssub.s32 256, 256
      %346 = vsyncadd [#allocation4], %s345
      %s348 = sshll.u32 [#allocation8], 4
      %s349 = int_to_ptr.vmem [resolvable:$true] %s348
      %351 = dma.vmem_to_hbm [thread:$0]  %s349, 256, %s5, [#allocation4]
    $region37: #{tpu_custom_call.1} parent=1 // pred_fallthru
      _
    // Predicated region
    $region38: #{tpu_custom_call.1} parent=1 // pred_check
      _
    $region39: #{tpu_custom_call.1} parent=1 // pred_check_branch
      %353 = sbr.rel (0) target = $region41
    $region40: #{tpu_custom_call.1} parent=1 // pred_region
      %354 = dma.done [#allocation4], 256
    $region41: #{tpu_custom_call.1} parent=1 // pred_fallthru
      _
    %355 = vsyncpa [#allocation3], 1
    %356 = vsyncpa [#allocation6], 1
    %357 = vsyncpa [#allocation4], 1

</llo_original>
